<compile_context>
chip_gen: v7x
topology: tpu7x:2x2x1
jax: 0.10.0
libtpu: 0.0.40
codegen_flags: <defaults>
</compile_context>

<pallas_src>
import jax
import jax.numpy as jnp
from jax.experimental import pallas as pl
from jax.experimental.pallas import tpu as pltpu


def _round_up(n, m):
    return ((n + m - 1) // m) * m


def _pick_chunk(T, block_b, I, *, max_steps=128, vmem_budget_bytes=8 * 1024 * 1024):
    """Largest divisor of T (<= max_steps) whose double-buffered x chunk fits the budget."""
    best = 1
    for c in range(1, min(T, max_steps) + 1):
        if T % c:
            continue
        bytes_needed = 2 * c * block_b * I * 4  # double-buffered f32 x chunk
        if bytes_needed <= vmem_budget_bytes:
            best = c
    return best


def rnn_kernel(x_ref, w_ih_ref, w_hh_ref, b_ref, w1_ref, b1_ref, w2_ref, b2_ref,
               out_ref, h_ref):
    # x_ref   : (chunk_t * block_b, I)   rows ordered [t0: b0..b_{B-1}, t1: ..., ...]
    # h_ref   : (block_b, Hp)            hidden-state carry, persists across grid steps
    # out_ref : (block_b, Op)            lane-dense padded output (written on last chunk)
    t_idx = pl.program_id(1)
    block_b, hp = h_ref.shape
    chunk_t = x_ref.shape[0] // block_b

    @pl.when(t_idx == 0)
    def _init():
        h_ref[...] = jnp.zeros_like(h_ref)

    # Hoisted input projection: one (chunk_t*block_b, I) x (I, Hp) MXU matmul per
    # chunk; the RNN bias folds in here once per chunk (not once per step).
    pre = jnp.dot(x_ref[...], w_ih_ref[...],
                  preferred_element_type=jnp.float32) + b_ref[...]
    pre = pre.reshape(chunk_t, block_b, hp)

    w_hh = w_hh_ref[...]
    h = h_ref[...]
    # Fully unrolled recurrence: only h @ W_hh + add + tanh remain on the serial
    # critical path; per-step operands are static, sublane/lane tile aligned.
    for j in range(chunk_t):
        h = jnp.tanh(pre[j] + jnp.dot(h, w_hh, preferred_element_type=jnp.float32))
    h_ref[...] = h

    # MLP head only on the final time chunk; single lane-dense store of the output.
    @pl.when(t_idx == pl.num_programs(1) - 1)
    def _head():
        hid = jnp.dot(h, w1_ref[...], preferred_element_type=jnp.float32) + b1_ref[...]
        hid = jnp.maximum(hid, 0.0)
        out = jnp.dot(hid, w2_ref[...], preferred_element_type=jnp.float32) + b2_ref[...]
        out_ref[...] = out.astype(out_ref.dtype)


def rnn_forward(x, params, *, chunk_t=None, block_b=None):
    """x: (B, T, I) float32.  Returns (B, output_size) float32.

    chunk_t : time steps per grid iteration (must divide T).
    block_b : batch rows per grid iteration (multiple of 8 dividing padded B).
              On v7x pass e.g. block_b = padded_B // 2 to shard across both TCs.
    """
    w_ih, w_hh, b_ih, b_hh, w1, b1, w2, b2 = params
    B, T, I = x.shape
    H = w_hh.shape[0]
    O = w2.shape[1]

    # Hardware-friendly padding: sublanes (8) on batch, lanes (128) on H and O.
    Bp = _round_up(B, 8)
    Hp = _round_up(H, 128)
    Op = _round_up(O, 128)

    if block_b is None:
        block_b = Bp
    assert block_b % 8 == 0 and Bp % block_b == 0, \
        "block_b must be a multiple of 8 dividing padded B"
    if chunk_t is None:
        chunk_t = _pick_chunk(T, block_b, I)
    assert T % chunk_t == 0, "chunk_t must divide T"
    nB = Bp // block_b
    nT = T // chunk_t

    # Pad params with zeros (exact: padded lanes contribute 0 and stay 0 through tanh).
    pad2 = lambda a, r, c: jnp.pad(a, ((0, r - a.shape[0]), (0, c - a.shape[1])))
    w_ih_p = pad2(w_ih, I, Hp)
    w_hh_p = pad2(w_hh, Hp, Hp)
    b_p = pad2(b_ih + b_hh, 1, Hp)
    w1_p = pad2(w1, Hp, Hp)
    b1_p = pad2(b1, 1, Hp)
    w2_p = pad2(w2, Hp, Op)
    b2_p = pad2(b2, 1, Op)

    # Pad batch and relayout x so each (batch-block, time-chunk) is one contiguous
    # 2-D tile with rows ordered [t*block_b + b].  Pad+transpose+reshape fuse into a
    # single XLA copy feeding the kernel (no standalone transpose pass).
    x_p = jnp.pad(x, ((0, Bp - B), (0, 0), (0, 0)))                  # (Bp, T, I)
    x_r = (x_p.reshape(nB, block_b, T, I)
              .transpose(0, 2, 1, 3)                                 # (nB, T, block_b, I)
              .reshape(nB, T * block_b, I))

    const = lambda b, t: (0, 0)
    grid_spec = pltpu.PrefetchScalarGridSpec(
        num_scalar_prefetch=0,
        grid=(nB, nT),
        in_specs=[
            pl.BlockSpec((None, chunk_t * block_b, I), lambda b, t: (b, t, 0)),  # x (streamed)
            pl.BlockSpec((I, Hp), const),     # W_ih^T           (resident: constant index)
            pl.BlockSpec((Hp, Hp), const),    # W_hh^T
            pl.BlockSpec((1, Hp), const),     # b_ih + b_hh
            pl.BlockSpec((Hp, Hp), const),    # fc1.weight^T
            pl.BlockSpec((1, Hp), const),     # fc1.bias
            pl.BlockSpec((Hp, Op), const),    # fc2.weight^T
            pl.BlockSpec((1, Op), const),     # fc2.bias
        ],
        out_specs=pl.BlockSpec((block_b, Op), lambda b, t: (b, 0)),
        scratch_shapes=[pltpu.VMEM((block_b, Hp), jnp.float32)],      # hidden-state carry
    )

    out_padded = pl.pallas_call(
        rnn_kernel,
        out_shape=jax.ShapeDtypeStruct((Bp, Op), jnp.float32),
        grid_spec=grid_spec,
        compiler_params=pltpu.CompilerParams(
            dimension_semantics=("parallel", "arbitrary"),
            vmem_limit_bytes=32 * 1024 * 1024,   # safe headroom on v7x (64 MiB physical)
        ),
    )(x_r, w_ih_p, w_hh_p, b_p, w1_p, b1_p, w2_p, b2_p)

    return out_padded[:B, :O]


def init_params(key, input_size, hidden_size, output_size):
    """Deterministic init mimicking PyTorch's uniform(-1/sqrt(fan), 1/sqrt(fan)).
    Weights stored pre-transposed: (in_features, out_features)."""
    ks = jax.random.split(key, 8)
    s = 1.0 / jnp.sqrt(hidden_size)
    u = lambda k, shape: jax.random.uniform(k, shape, jnp.float32, -s, s)
    w_ih = u(ks[0], (input_size, hidden_size))     # W_ih^T
    w_hh = u(ks[1], (hidden_size, hidden_size))    # W_hh^T
    b_ih = u(ks[2], (1, hidden_size))
    b_hh = u(ks[3], (1, hidden_size))
    w1 = u(ks[4], (hidden_size, hidden_size))      # fc1.weight^T
    b1 = u(ks[5], (1, hidden_size))
    w2 = u(ks[6], (hidden_size, output_size))      # fc2.weight^T
    b2 = u(ks[7], (1, output_size))
    return (w_ih, w_hh, b_ih, b_hh, w1, b1, w2, b2)


def rnn_reference(x, params):
    """Pure-JAX reference matching nn.RNN(tanh, batch_first) + fc1/relu + fc2."""
    w_ih, w_hh, b_ih, b_hh, w1, b1, w2, b2 = params
    B, T, _ = x.shape
    H = w_hh.shape[0]
    h = jnp.zeros((B, H), jnp.float32)
    for t in range(T):
        h = jnp.tanh(x[:, t, :] @ w_ih + h @ w_hh + b_ih + b_hh)
    hid = jnp.maximum(h @ w1 + b1, 0.0)
    return hid @ w2 + b2


if __name__ == "__main__":
    B, T = 2, 8
    input_size, hidden_size, output_size = 16, 32, 8

    key = jax.random.PRNGKey(0)
    kx, kp = jax.random.split(key)
    x = jax.random.normal(kx, (B, T, input_size), dtype=jnp.float32)
    params = init_params(kp, input_size, hidden_size, output_size)

    ref = rnn_reference(x, params)

    # Multi-chunk grid: exercises the cross-chunk hidden-state carry (pl.when init/head).
    out = jax.block_until_ready(rnn_forward(x, params, chunk_t=4))
    assert out.shape == (B, output_size)
    assert jnp.allclose(out, ref, atol=1e-4, rtol=1e-4), "mismatch vs reference (chunk_t=4)"

    # Single-chunk grid (auto chunk picker -> whole sequence in one block).
    out2 = jax.block_until_ready(rnn_forward(x, params))
    assert jnp.allclose(out2, ref, atol=1e-4, rtol=1e-4), "mismatch vs reference (default chunk)"

    print("KERNEL_OK")
</pallas_src>

<mosaic_0001>
module attributes {stable_mosaic.version = 11 : i64} {
  func.func @rnn_kernel(%arg0: i32, %arg1: i32, %arg2: memref<1x32x16xf32, #tpu.memory_space<vmem>>, %arg3: memref<16x128xf32, #tpu.memory_space<vmem>>, %arg4: memref<128x128xf32, #tpu.memory_space<vmem>>, %arg5: memref<1x128xf32, #tpu.memory_space<vmem>>, %arg6: memref<128x128xf32, #tpu.memory_space<vmem>>, %arg7: memref<1x128xf32, #tpu.memory_space<vmem>>, %arg8: memref<128x128xf32, #tpu.memory_space<vmem>>, %arg9: memref<1x128xf32, #tpu.memory_space<vmem>>, %arg10: memref<8x128xf32, #tpu.memory_space<vmem>>, %arg11: memref<8x128xf32, #tpu.memory_space<vmem>>) attributes {dimension_semantics = [#tpu.dimension_semantics<parallel>, #tpu.dimension_semantics<arbitrary>], iteration_bounds = array<i64: 1, 2>, scalar_prefetch = 0 : i64, scratch_operands = 1 : i64, tpu.core_type = #tpu.core_type<tc>, window_params = [{transform_indices = @transform_0, window_bounds = array<i64: 1, 32, 16>}, {pipeline_mode = #tpu.pipeline_mode<synchronous>, transform_indices = @transform_1, window_bounds = array<i64: 16, 128>}, {pipeline_mode = #tpu.pipeline_mode<synchronous>, transform_indices = @transform_2, window_bounds = array<i64: 128, 128>}, {pipeline_mode = #tpu.pipeline_mode<synchronous>, transform_indices = @transform_3, window_bounds = array<i64: 1, 128>}, {pipeline_mode = #tpu.pipeline_mode<synchronous>, transform_indices = @transform_4, window_bounds = array<i64: 128, 128>}, {pipeline_mode = #tpu.pipeline_mode<synchronous>, transform_indices = @transform_5, window_bounds = array<i64: 1, 128>}, {pipeline_mode = #tpu.pipeline_mode<synchronous>, transform_indices = @transform_6, window_bounds = array<i64: 128, 128>}, {pipeline_mode = #tpu.pipeline_mode<synchronous>, transform_indices = @transform_7, window_bounds = array<i64: 1, 128>}, {transform_indices = @transform_8, window_bounds = array<i64: 8, 128>}]} {
    %c0_i32 = arith.constant 0 : i32
    %0 = arith.cmpi eq, %arg1, %c0_i32 : i32
    %1 = arith.extui %0 : i1 to i32
    %c0_i32_0 = arith.constant 0 : i32
    %2 = arith.cmpi ne, %1, %c0_i32_0 : i32
    scf.if %2 {
      %cst_18 = arith.constant 0.000000e+00 : f32
      %37 = vector.broadcast %cst_18 : f32 to vector<8x128xf32>
      %c0_19 = arith.constant 0 : index
      %c0_20 = arith.constant 0 : index
      %38 = vector.load %arg11[%c0_19, %c0_20] : memref<8x128xf32, #tpu.memory_space<vmem>>, vector<8x128xf32>
      tpu.vector_store %arg11[%c0_19, %c0_20], %37 {strides = array<i32>} : memref<8x128xf32, #tpu.memory_space<vmem>>, vector<8x128xf32>,
    } else {
    }
    %c0 = arith.constant 0 : index
    %c0_1 = arith.constant 0 : index
    %c0_2 = arith.constant 0 : index
    %3 = vector.load %arg2[%c0, %c0_1, %c0_2] : memref<1x32x16xf32, #tpu.memory_space<vmem>>, vector<1x32x16xf32>
    %4 = vector.shape_cast %3 : vector<1x32x16xf32> to vector<32x16xf32>
    %c0_3 = arith.constant 0 : index
    %c0_4 = arith.constant 0 : index
    %5 = vector.load %arg3[%c0_3, %c0_4] : memref<16x128xf32, #tpu.memory_space<vmem>>, vector<16x128xf32>
    %cst = arith.constant dense<0.000000e+00> : vector<32x128xf32>
    %6 = tpu.matmul %4, %5, %cst {dimension_numbers = #tpu.dot_dimension_numbers<[1], [0], [0], [1], [0, 0, 1, 1], [], []>} : vector<32x16xf32>, vector<16x128xf32>, vector<32x128xf32> -> vector<32x128xf32>
    %c0_5 = arith.constant 0 : index
    %c0_6 = arith.constant 0 : index
    %7 = vector.load %arg5[%c0_5, %c0_6] : memref<1x128xf32, #tpu.memory_space<vmem>>, vector<1x128xf32>
    %8 = vector.broadcast %7 : vector<1x128xf32> to vector<32x128xf32>
    %9 = arith.addf %6, %8 : vector<32x128xf32>
    %10 = vector.shape_cast %9 : vector<32x128xf32> to vector<4x8x128xf32>
    %c0_7 = arith.constant 0 : index
    %c0_8 = arith.constant 0 : index
    %11 = vector.load %arg4[%c0_7, %c0_8] : memref<128x128xf32, #tpu.memory_space<vmem>>, vector<128x128xf32>
    %c0_9 = arith.constant 0 : index
    %c0_10 = arith.constant 0 : index
    %12 = vector.load %arg11[%c0_9, %c0_10] : memref<8x128xf32, #tpu.memory_space<vmem>>, vector<8x128xf32>
    %13 = vector.extract_strided_slice %10 {offsets = [0, 0, 0], sizes = [1, 8, 128], strides = [1, 1, 1]} : vector<4x8x128xf32> to vector<1x8x128xf32>
    %14 = vector.shape_cast %13 : vector<1x8x128xf32> to vector<8x128xf32>
    %cst_11 = arith.constant dense<0.000000e+00> : vector<8x128xf32>
    %15 = tpu.matmul %12, %11, %cst_11 {dimension_numbers = #tpu.dot_dimension_numbers<[1], [0], [0], [1], [0, 0, 1, 1], [], []>} : vector<8x128xf32>, vector<128x128xf32>, vector<8x128xf32> -> vector<8x128xf32>
    %16 = arith.addf %14, %15 : vector<8x128xf32>
    %17 = math.tanh %16 : vector<8x128xf32>
    %18 = vector.extract_strided_slice %10 {offsets = [1, 0, 0], sizes = [1, 8, 128], strides = [1, 1, 1]} : vector<4x8x128xf32> to vector<1x8x128xf32>
    %19 = vector.shape_cast %18 : vector<1x8x128xf32> to vector<8x128xf32>
    %cst_12 = arith.constant dense<0.000000e+00> : vector<8x128xf32>
    %20 = tpu.matmul %17, %11, %cst_12 {dimension_numbers = #tpu.dot_dimension_numbers<[1], [0], [0], [1], [0, 0, 1, 1], [], []>} : vector<8x128xf32>, vector<128x128xf32>, vector<8x128xf32> -> vector<8x128xf32>
    %21 = arith.addf %19, %20 : vector<8x128xf32>
    %22 = math.tanh %21 : vector<8x128xf32>
    %23 = vector.extract_strided_slice %10 {offsets = [2, 0, 0], sizes = [1, 8, 128], strides = [1, 1, 1]} : vector<4x8x128xf32> to vector<1x8x128xf32>
    %24 = vector.shape_cast %23 : vector<1x8x128xf32> to vector<8x128xf32>
    %cst_13 = arith.constant dense<0.000000e+00> : vector<8x128xf32>
    %25 = tpu.matmul %22, %11, %cst_13 {dimension_numbers = #tpu.dot_dimension_numbers<[1], [0], [0], [1], [0, 0, 1, 1], [], []>} : vector<8x128xf32>, vector<128x128xf32>, vector<8x128xf32> -> vector<8x128xf32>
    %26 = arith.addf %24, %25 : vector<8x128xf32>
    %27 = math.tanh %26 : vector<8x128xf32>
    %28 = vector.extract_strided_slice %10 {offsets = [3, 0, 0], sizes = [1, 8, 128], strides = [1, 1, 1]} : vector<4x8x128xf32> to vector<1x8x128xf32>
    %29 = vector.shape_cast %28 : vector<1x8x128xf32> to vector<8x128xf32>
    %cst_14 = arith.constant dense<0.000000e+00> : vector<8x128xf32>
    %30 = tpu.matmul %27, %11, %cst_14 {dimension_numbers = #tpu.dot_dimension_numbers<[1], [0], [0], [1], [0, 0, 1, 1], [], []>} : vector<8x128xf32>, vector<128x128xf32>, vector<8x128xf32> -> vector<8x128xf32>
    %31 = arith.addf %29, %30 : vector<8x128xf32>
    %32 = math.tanh %31 : vector<8x128xf32>
    %c0_15 = arith.constant 0 : index
    %c0_16 = arith.constant 0 : index
    %33 = vector.load %arg11[%c0_15, %c0_16] : memref<8x128xf32, #tpu.memory_space<vmem>>, vector<8x128xf32>
    tpu.vector_store %arg11[%c0_15, %c0_16], %32 {strides = array<i32>} : memref<8x128xf32, #tpu.memory_space<vmem>>, vector<8x128xf32>,
    %c1_i32 = arith.constant 1 : i32
    %34 = arith.cmpi eq, %arg1, %c1_i32 : i32
    %35 = arith.extui %34 : i1 to i32
    %c0_i32_17 = arith.constant 0 : i32
    %36 = arith.cmpi ne, %35, %c0_i32_17 : i32
    scf.if %36 {
      %c0_18 = arith.constant 0 : index
      %c0_19 = arith.constant 0 : index
      %37 = vector.load %arg6[%c0_18, %c0_19] : memref<128x128xf32, #tpu.memory_space<vmem>>, vector<128x128xf32>
      %cst_20 = arith.constant dense<0.000000e+00> : vector<8x128xf32>
      %38 = tpu.matmul %32, %37, %cst_20 {dimension_numbers = #tpu.dot_dimension_numbers<[1], [0], [0], [1], [0, 0, 1, 1], [], []>} : vector<8x128xf32>, vector<128x128xf32>, vector<8x128xf32> -> vector<8x128xf32>
      %c0_21 = arith.constant 0 : index
      %c0_22 = arith.constant 0 : index
      %39 = vector.load %arg7[%c0_21, %c0_22] : memref<1x128xf32, #tpu.memory_space<vmem>>, vector<1x128xf32>
      %40 = vector.broadcast %39 : vector<1x128xf32> to vector<8x128xf32>
      %41 = arith.addf %38, %40 : vector<8x128xf32>
      %cst_23 = arith.constant 0.000000e+00 : f32
      %42 = vector.broadcast %cst_23 : f32 to vector<8x128xf32>
      %43 = arith.maximumf %41, %42 : vector<8x128xf32>
      %c0_24 = arith.constant 0 : index
      %c0_25 = arith.constant 0 : index
      %44 = vector.load %arg8[%c0_24, %c0_25] : memref<128x128xf32, #tpu.memory_space<vmem>>, vector<128x128xf32>
      %cst_26 = arith.constant dense<0.000000e+00> : vector<8x128xf32>
      %45 = tpu.matmul %43, %44, %cst_26 {dimension_numbers = #tpu.dot_dimension_numbers<[1], [0], [0], [1], [0, 0, 1, 1], [], []>} : vector<8x128xf32>, vector<128x128xf32>, vector<8x128xf32> -> vector<8x128xf32>
      %c0_27 = arith.constant 0 : index
      %c0_28 = arith.constant 0 : index
      %46 = vector.load %arg9[%c0_27, %c0_28] : memref<1x128xf32, #tpu.memory_space<vmem>>, vector<1x128xf32>
      %47 = vector.broadcast %46 : vector<1x128xf32> to vector<8x128xf32>
      %48 = arith.addf %45, %47 : vector<8x128xf32>
      %c0_29 = arith.constant 0 : index
      %c0_30 = arith.constant 0 : index
      %49 = vector.load %arg10[%c0_29, %c0_30] : memref<8x128xf32, #tpu.memory_space<vmem>>, vector<8x128xf32>
      tpu.vector_store %arg10[%c0_29, %c0_30], %48 {strides = array<i32>} : memref<8x128xf32, #tpu.memory_space<vmem>>, vector<8x128xf32>,
    } else {
    }
    return
  }
  func.func @transform_0(%arg0: i32, %arg1: i32) -> (i32, i32, i32) {
    %c0_i32 = arith.constant 0 : i32
    %c0_i32_0 = arith.constant 0 : i32
    return %arg0, %arg1, %c0_i32 : i32, i32, i32
  }
  func.func @transform_1(%arg0: i32, %arg1: i32) -> (i32, i32) {
    %c0_i32 = arith.constant 0 : i32
    %c0_i32_0 = arith.constant 0 : i32
    %c0_i32_1 = arith.constant 0 : i32
    return %c0_i32, %c0_i32_0 : i32, i32
  }
  func.func @transform_2(%arg0: i32, %arg1: i32) -> (i32, i32) {
    %c0_i32 = arith.constant 0 : i32
    %c0_i32_0 = arith.constant 0 : i32
    %c0_i32_1 = arith.constant 0 : i32
    return %c0_i32, %c0_i32_0 : i32, i32
  }
  func.func @transform_3(%arg0: i32, %arg1: i32) -> (i32, i32) {
    %c0_i32 = arith.constant 0 : i32
    %c0_i32_0 = arith.constant 0 : i32
    %c0_i32_1 = arith.constant 0 : i32
    return %c0_i32, %c0_i32_0 : i32, i32
  }
  func.func @transform_4(%arg0: i32, %arg1: i32) -> (i32, i32) {
    %c0_i32 = arith.constant 0 : i32
    %c0_i32_0 = arith.constant 0 : i32
    %c0_i32_1 = arith.constant 0 : i32
    return %c0_i32, %c0_i32_0 : i32, i32
  }
  func.func @transform_5(%arg0: i32, %arg1: i32) -> (i32, i32) {
    %c0_i32 = arith.constant 0 : i32
    %c0_i32_0 = arith.constant 0 : i32
    %c0_i32_1 = arith.constant 0 : i32
    return %c0_i32, %c0_i32_0 : i32, i32
  }
  func.func @transform_6(%arg0: i32, %arg1: i32) -> (i32, i32) {
    %c0_i32 = arith.constant 0 : i32
    %c0_i32_0 = arith.constant 0 : i32
    %c0_i32_1 = arith.constant 0 : i32
    return %c0_i32, %c0_i32_0 : i32, i32
  }
  func.func @transform_7(%arg0: i32, %arg1: i32) -> (i32, i32) {
    %c0_i32 = arith.constant 0 : i32
    %c0_i32_0 = arith.constant 0 : i32
    %c0_i32_1 = arith.constant 0 : i32
    return %c0_i32, %c0_i32_0 : i32, i32
  }
  func.func @transform_8(%arg0: i32, %arg1: i32) -> (i32, i32) {
    %c0_i32 = arith.constant 0 : i32
    %c0_i32_0 = arith.constant 0 : i32
    return %arg0, %c0_i32 : i32, i32
  }
}

</mosaic_0001>

<llo_original>
// kernel: tpu_custom_call.1
$region0: #{tpu_custom_call.1}
  #allocation0 [shape = 'u32[]', space=smem, size = 0x4, offset = 0x4, fixed_abs, tag = 'smem constant byte address 0x4 - core index']
  #allocation1 [shape = 'u32[144,128]{1,0:T(1,128)}', space=vmem, size = 0x12000, scoped, tag = 'internal scratch']
  #allocation2 [shape = 'f32[8,128]{1,0:T(8,128)}', space=vmem, size = 0x1000, scoped, tag = 'scratch operand']
  %s0 = inlined_call_operand.vmem [shape: f32[1,64,16], index: 0, kind: input, shape index: {}]
  %s1 = inlined_call_operand.vmem [shape: f32[16,128], index: 1, kind: input, shape index: {}]
  %s2 = inlined_call_operand.hbm [shape: f32[128,128], index: 2, kind: input, shape index: {}]
  %s3 = inlined_call_operand.vmem [shape: f32[1,128], index: 3, kind: input, shape index: {}]
  %s4 = inlined_call_operand.hbm [shape: f32[128,128], index: 4, kind: input, shape index: {}]
  %s5 = inlined_call_operand.vmem [shape: f32[1,128], index: 5, kind: input, shape index: {}]
  %s6 = inlined_call_operand.hbm [shape: f32[128,128], index: 6, kind: input, shape index: {}]
  %s7 = inlined_call_operand.vmem [shape: f32[1,128], index: 7, kind: input, shape index: {}]
  %s8 = inlined_call_operand.hbm [shape: f32[8,128], index: 8, kind: output, shape index: {}]
  %s9 = sld [smem:[#allocation0]]
  $region85: #{tpu_custom_call.1} parent=0
    _
  %s11 = ssub.s32 1, %s9
  %s12 = scalar_select 0, %s11, %s9
  $region1: #{tpu_custom_call.1} parent=0
    #allocation3 [shape = 'u8[65536]{0}', space=vmem, size = 0x10000, scoped, tag = 'input window, operand 2, single buffered']
    #allocation4 [shape = 's32[2]{0}', space=sflag, size = 0x8, scoped, tag = 'scoped memory for tpu_custom_call.1']
    #allocation5 [shape = 's32[2]{0}', space=sflag, size = 0x8, scoped, tag = 'scoped memory for tpu_custom_call.1']
    #allocation6 [shape = 'u8[65536]{0}', space=vmem, size = 0x10000, scoped, tag = 'input window, operand 4, single buffered']
    #allocation7 [shape = 's32[1]{0}', space=sflag, size = 0x4, scoped, tag = 'scoped memory for tpu_custom_call.1']
    #allocation8 [shape = 'u8[65536]{0}', space=vmem, size = 0x10000, scoped, tag = 'input window, operand 6, single buffered']
    #allocation9 [shape = 'u8[4096]{0}', space=vmem, size = 0x1000, scoped, tag = 'output window, operand 0, single buffered']
    %13 = vsyncpa [#allocation4], 0
    %14 = vsyncpa [#allocation7], 0
    %15 = vsyncpa [#allocation5], 0
    loop: start=0, step=1, limit=4
    $region2: #{tpu_custom_call.1} parent=1 // loop_pre_header
      _
    $region3: #{tpu_custom_call.1} parent=1 // loop_header
      %s17 = sphi 0, %s21
      %p18 = scmp.ge.s32.totalorder %s17, 4
      %s24 = sphi 0, %s36
      %s25 = sphi 0, %s32
      %s26 = sphi 0, %s24
      %s27 = sphi 0, %s25
      %s28 = sphi 0, %s26
      %s29 = sphi 0, %s27
      %s41 = sphi 0, %s43
      %s44 = sphi 0, %s41
      %s45 = sphi 0, %s44
      %s61 = sphi 0, %s45
      %s65 = sphi 0, %s65
      %s67 = sphi 0, %s65
      %s68 = sphi 0, %s67
      %s82 = sphi 0, %s68
      %s86 = sphi 0, %s86
      %s88 = sphi 0, %s86
      %s89 = sphi 0, %s88
      %s103 = sphi 0, %s89
      %s107 = sphi 0, %s107
      %s109 = sphi 0, %s107
      %s110 = sphi 0, %s109
      %s124 = sphi 0, %s110
      %s128 = sphi 0, %s128
      %s130 = sphi 0, %s128
      %s131 = sphi 0, %s130
      %s145 = sphi 0, %s131
      %s149 = sphi 0, %s149
      %s151 = sphi 0, %s149
      %s152 = sphi 0, %s151
      %s166 = sphi 0, %s152
      %s170 = sphi 0, %s170
      %s172 = sphi 0, %s170
      %s173 = sphi 0, %s172
      %s187 = sphi 0, %s173
      %s191 = sphi 0, %s191
      %s193 = sphi 0, %s191
      %s194 = sphi 0, %s193
      %s208 = sphi 0, %s194
      %s214 = sphi 0, %s216
      %s217 = sphi 0, %s214
      %s218 = sphi 0, %s217
      %s234 = sphi 0, %s218
    $region4: #{tpu_custom_call.1} parent=1 // loop_header_branch
      %20 = sbr.rel (%p18) target = $region8
    $region5: #{tpu_custom_call.1} parent=1 // loop_body
      %s22 = ssub.s32 %s17, 1
      %s23 = ssub.s32 %s17, 2
      %s30 = sadd.s32 1, %s25
      %p31 = scmp.ge.s32.totalorder %s30, 2
      %s32 = scalar_select %p31, 0, %s30
      %s33 = sadd.s32 1, %s24
      %s34 = scalar_select %p31, %s33, %s24
      %p35 = scmp.ge.s32.totalorder %s34, 1
      %s36 = scalar_select %p35, 0, %s34
      %s37 = ssub.s32 %s24, %s36
      %s38 = ssub.s32 %s25, %s32
      %s39 = sor.u32 %s37, %s38
      %p40 = scmp.eq.s32.totalorder %s39, 0
      %s42 = sadd.s32 %s41, 1
      %s43 = scalar_select %p40, %s41, %s42
      %p46 = pneg %p40
      %p47 = scmp.eq.s32.totalorder %s17, 1
      %p48 = por %p46, %p47
      %p49 = scmp.ne.s32.totalorder %s41, %s44
      %p50 = scmp.eq.s32.totalorder %s17, 0
      %p51 = por %p49, %p50
      %p52 = scmp.ne.s32.totalorder %s41, %s44
      %p53 = scmp.eq.s32.totalorder %s22, 1
      %p54 = por %p52, %p53
      %p55 = scmp.ne.s32.totalorder %s44, %s45
      %p56 = scmp.eq.s32.totalorder %s22, 0
      %p57 = por %p55, %p56
      %p58 = scmp.ne.s32.totalorder %s44, %s45
      %p59 = scmp.eq.s32.totalorder %s23, 1
      %p60 = por %p58, %p59
      %p62 = scmp.ne.s32.totalorder %s45, %s61
      %p63 = scmp.eq.s32.totalorder %s23, 0
      %p64 = por %p62, %p63
      %s66 = sadd.s32 %s65, 1
      %p69 = scmp.eq.s32.totalorder %s17, 1
      %p70 = scmp.ne.s32.totalorder %s65, %s67
      %p71 = scmp.eq.s32.totalorder %s17, 0
      %p72 = por %p70, %p71
      %p73 = scmp.ne.s32.totalorder %s65, %s67
      %p74 = scmp.eq.s32.totalorder %s22, 1
      %p75 = por %p73, %p74
      %p76 = scmp.ne.s32.totalorder %s67, %s68
      %p77 = scmp.eq.s32.totalorder %s22, 0
      %p78 = por %p76, %p77
      %p79 = scmp.ne.s32.totalorder %s67, %s68
      %p80 = scmp.eq.s32.totalorder %s23, 1
      %p81 = por %p79, %p80
      %p83 = scmp.ne.s32.totalorder %s68, %s82
      %p84 = scmp.eq.s32.totalorder %s23, 0
      %p85 = por %p83, %p84
      %s87 = sadd.s32 %s86, 1
      %p90 = scmp.eq.s32.totalorder %s17, 1
      %p91 = scmp.ne.s32.totalorder %s86, %s88
      %p92 = scmp.eq.s32.totalorder %s17, 0
      %p93 = por %p91, %p92
      %p94 = scmp.ne.s32.totalorder %s86, %s88
      %p95 = scmp.eq.s32.totalorder %s22, 1
      %p96 = por %p94, %p95
      %p97 = scmp.ne.s32.totalorder %s88, %s89
      %p98 = scmp.eq.s32.totalorder %s22, 0
      %p99 = por %p97, %p98
      %p100 = scmp.ne.s32.totalorder %s88, %s89
      %p101 = scmp.eq.s32.totalorder %s23, 1
      %p102 = por %p100, %p101
      %p104 = scmp.ne.s32.totalorder %s89, %s103
      %p105 = scmp.eq.s32.totalorder %s23, 0
      %p106 = por %p104, %p105
      %s108 = sadd.s32 %s107, 1
      %p111 = scmp.eq.s32.totalorder %s17, 1
      %p112 = scmp.ne.s32.totalorder %s107, %s109
      %p113 = scmp.eq.s32.totalorder %s17, 0
      %p114 = por %p112, %p113
      %p115 = scmp.ne.s32.totalorder %s107, %s109
      %p116 = scmp.eq.s32.totalorder %s22, 1
      %p117 = por %p115, %p116
      %p118 = scmp.ne.s32.totalorder %s109, %s110
      %p119 = scmp.eq.s32.totalorder %s22, 0
      %p120 = por %p118, %p119
      %p121 = scmp.ne.s32.totalorder %s109, %s110
      %p122 = scmp.eq.s32.totalorder %s23, 1
      %p123 = por %p121, %p122
      %p125 = scmp.ne.s32.totalorder %s110, %s124
      %p126 = scmp.eq.s32.totalorder %s23, 0
      %p127 = por %p125, %p126
      %s129 = sadd.s32 %s128, 1
      %p132 = scmp.eq.s32.totalorder %s17, 1
      %p133 = scmp.ne.s32.totalorder %s128, %s130
      %p134 = scmp.eq.s32.totalorder %s17, 0
      %p135 = por %p133, %p134
      %p136 = scmp.ne.s32.totalorder %s128, %s130
      %p137 = scmp.eq.s32.totalorder %s22, 1
      %p138 = por %p136, %p137
      %p139 = scmp.ne.s32.totalorder %s130, %s131
      %p140 = scmp.eq.s32.totalorder %s22, 0
      %p141 = por %p139, %p140
      %p142 = scmp.ne.s32.totalorder %s130, %s131
      %p143 = scmp.eq.s32.totalorder %s23, 1
      %p144 = por %p142, %p143
      %p146 = scmp.ne.s32.totalorder %s131, %s145
      %p147 = scmp.eq.s32.totalorder %s23, 0
      %p148 = por %p146, %p147
      %s150 = sadd.s32 %s149, 1
      %p153 = scmp.eq.s32.totalorder %s17, 1
      %p154 = scmp.ne.s32.totalorder %s149, %s151
      %p155 = scmp.eq.s32.totalorder %s17, 0
      %p156 = por %p154, %p155
      %p157 = scmp.ne.s32.totalorder %s149, %s151
      %p158 = scmp.eq.s32.totalorder %s22, 1
      %p159 = por %p157, %p158
      %p160 = scmp.ne.s32.totalorder %s151, %s152
      %p161 = scmp.eq.s32.totalorder %s22, 0
      %p162 = por %p160, %p161
      %p163 = scmp.ne.s32.totalorder %s151, %s152
      %p164 = scmp.eq.s32.totalorder %s23, 1
      %p165 = por %p163, %p164
      %p167 = scmp.ne.s32.totalorder %s152, %s166
      %p168 = scmp.eq.s32.totalorder %s23, 0
      %p169 = por %p167, %p168
      %s171 = sadd.s32 %s170, 1
      %p174 = scmp.eq.s32.totalorder %s17, 1
      %p175 = scmp.ne.s32.totalorder %s170, %s172
      %p176 = scmp.eq.s32.totalorder %s17, 0
      %p177 = por %p175, %p176
      %p178 = scmp.ne.s32.totalorder %s170, %s172
      %p179 = scmp.eq.s32.totalorder %s22, 1
      %p180 = por %p178, %p179
      %p181 = scmp.ne.s32.totalorder %s172, %s173
      %p182 = scmp.eq.s32.totalorder %s22, 0
      %p183 = por %p181, %p182
      %p184 = scmp.ne.s32.totalorder %s172, %s173
      %p185 = scmp.eq.s32.totalorder %s23, 1
      %p186 = por %p184, %p185
      %p188 = scmp.ne.s32.totalorder %s173, %s187
      %p189 = scmp.eq.s32.totalorder %s23, 0
      %p190 = por %p188, %p189
      %s192 = sadd.s32 %s191, 1
      %p195 = scmp.eq.s32.totalorder %s17, 1
      %p196 = scmp.ne.s32.totalorder %s191, %s193
      %p197 = scmp.eq.s32.totalorder %s17, 0
      %p198 = por %p196, %p197
      %p199 = scmp.ne.s32.totalorder %s191, %s193
      %p200 = scmp.eq.s32.totalorder %s22, 1
      %p201 = por %p199, %p200
      %p202 = scmp.ne.s32.totalorder %s193, %s194
      %p203 = scmp.eq.s32.totalorder %s22, 0
      %p204 = por %p202, %p203
      %p205 = scmp.ne.s32.totalorder %s193, %s194
      %p206 = scmp.eq.s32.totalorder %s23, 1
      %p207 = por %p205, %p206
      %p209 = scmp.ne.s32.totalorder %s194, %s208
      %p210 = scmp.eq.s32.totalorder %s23, 0
      %p211 = por %p209, %p210
      %s212 = ssub.s32 %s24, %s36
      %p213 = scmp.eq.s32.totalorder %s212, 0
      %s215 = sadd.s32 %s214, 1
      %s216 = scalar_select %p213, %s214, %s215
      %p219 = pneg %p213
      %p220 = scmp.eq.s32.totalorder %s17, 1
      %p221 = por %p219, %p220
      %p222 = scmp.ne.s32.totalorder %s214, %s217
      %p223 = scmp.eq.s32.totalorder %s17, 0
      %p224 = por %p222, %p223
      %p225 = scmp.ne.s32.totalorder %s214, %s217
      %p226 = scmp.eq.s32.totalorder %s22, 1
      %p227 = por %p225, %p226
      %p228 = scmp.ne.s32.totalorder %s217, %s218
      %p229 = scmp.eq.s32.totalorder %s22, 0
      %p230 = por %p228, %p229
      %p231 = scmp.ne.s32.totalorder %s217, %s218
      %p232 = scmp.eq.s32.totalorder %s23, 1
      %p233 = por %p231, %p232
      %p235 = scmp.ne.s32.totalorder %s218, %s234
      %p236 = scmp.eq.s32.totalorder %s23, 0
      %p237 = por %p235, %p236
      %p238 = scmp.le.s32.totalorder 1, %s17
      %p239 = scmp.lt.s32.totalorder %s17, 3
      %p240 = pnand %p238, %p239
      %p241 = pneg %p240
      // Predicated region
      $region9: #{tpu_custom_call.1} parent=5 // pred_check
        _
      $region10: #{tpu_custom_call.1} parent=5 // pred_check_branch
        %243 = sbr.rel (%p240) target = $region12
      $region11: #{tpu_custom_call.1} parent=5 // pred_region
        %s244 = ssub.s32 %s17, 1
        // Predicated region
        $region13: #{tpu_custom_call.1} parent=11 // pred_check
          %p245 = pneg %p78
        $region14: #{tpu_custom_call.1} parent=11 // pred_check_branch
          %247 = sbr.rel (%p245) target = $region16
        $region15: #{tpu_custom_call.1} parent=11 // pred_region
          _
        $region16: #{tpu_custom_call.1} parent=11 // pred_fallthru
          _
        // Predicated region
        $region17: #{tpu_custom_call.1} parent=11 // pred_check
          %p248 = pneg %p99
        $region18: #{tpu_custom_call.1} parent=11 // pred_check_branch
          %250 = sbr.rel (%p248) target = $region20
        $region19: #{tpu_custom_call.1} parent=11 // pred_region
          %s252 = ssub.s32 2048, 2048
          %253 = vsyncadd [#allocation4], %s252
          %s254 = sshll.u32 [#allocation3], 4
          %s255 = int_to_ptr.vmem [resolvable:$true] %s254
          %260 = dma.hbm_to_vmem [thread:$0]  %s2, 2048, %s255, [#allocation4], 128, 128, 8
        $region20: #{tpu_custom_call.1} parent=11 // pred_fallthru
          _
        // Predicated region
        $region21: #{tpu_custom_call.1} parent=11 // pred_check
          %p261 = pneg %p120
        $region22: #{tpu_custom_call.1} parent=11 // pred_check_branch
          %263 = sbr.rel (%p261) target = $region24
        $region23: #{tpu_custom_call.1} parent=11 // pred_region
          _
        $region24: #{tpu_custom_call.1} parent=11 // pred_fallthru
          _
        // Predicated region
        $region25: #{tpu_custom_call.1} parent=11 // pred_check
          %p264 = pneg %p141
        $region26: #{tpu_custom_call.1} parent=11 // pred_check_branch
          %266 = sbr.rel (%p264) target = $region28
        $region27: #{tpu_custom_call.1} parent=11 // pred_region
          %s268 = ssub.s32 2048, 2048
          %269 = vsyncadd [#allocation7], %s268
          %s270 = sshll.u32 [#allocation6], 4
          %s271 = int_to_ptr.vmem [resolvable:$true] %s270
          %276 = dma.hbm_to_vmem [thread:$0]  %s4, 2048, %s271, [#allocation7], 128, 128, 8
        $region28: #{tpu_custom_call.1} parent=11 // pred_fallthru
          _
        // Predicated region
        $region29: #{tpu_custom_call.1} parent=11 // pred_check
          %p277 = pneg %p162
        $region30: #{tpu_custom_call.1} parent=11 // pred_check_branch
          %279 = sbr.rel (%p277) target = $region32
        $region31: #{tpu_custom_call.1} parent=11 // pred_region
          _
        $region32: #{tpu_custom_call.1} parent=11 // pred_fallthru
          _
        // Predicated region
        $region33: #{tpu_custom_call.1} parent=11 // pred_check
          %p280 = pneg %p183
        $region34: #{tpu_custom_call.1} parent=11 // pred_check_branch
          %282 = sbr.rel (%p280) target = $region36
        $region35: #{tpu_custom_call.1} parent=11 // pred_region
          %s284 = ssub.s32 2048, 2048
          %285 = vsyncadd [#allocation7], %s284
          %s286 = sshll.u32 [#allocation8], 4
          %s287 = int_to_ptr.vmem [resolvable:$true] %s286
          %292 = dma.hbm_to_vmem [thread:$0]  %s6, 2048, %s287, [#allocation7], 128, 128, 8
        $region36: #{tpu_custom_call.1} parent=11 // pred_fallthru
          _
        // Predicated region
        $region37: #{tpu_custom_call.1} parent=11 // pred_check
          %p293 = pneg %p204
        $region38: #{tpu_custom_call.1} parent=11 // pred_check_branch
          %295 = sbr.rel (%p293) target = $region40
        $region39: #{tpu_custom_call.1} parent=11 // pred_region
          _
        $region40: #{tpu_custom_call.1} parent=11 // pred_fallthru
          _
      $region12: #{tpu_custom_call.1} parent=5 // pred_fallthru
        _
      %p296 = scmp.lt.s32.totalorder %s17, 2
      // Predicated region
      $region41: #{tpu_custom_call.1} parent=5 // pred_check
        %p297 = pneg %p296
      $region42: #{tpu_custom_call.1} parent=5 // pred_check_branch
        %299 = sbr.rel (%p297) target = $region44
      $region43: #{tpu_custom_call.1} parent=5 // pred_region
        // Predicated region
        $region45: #{tpu_custom_call.1} parent=43 // pred_check
          %p300 = pneg %p51
        $region46: #{tpu_custom_call.1} parent=43 // pred_check_branch
          %302 = sbr.rel (%p300) target = $region48
        $region47: #{tpu_custom_call.1} parent=43 // pred_region
          %s303 = smul.u32 4, %s25
          %p304 = scmp.lt.s32.totalorder %s24, 0
          %s305 = scalar_select %p304, %s24, 0
          %p306 = scmp.lt.s32.totalorder %s303, 7
          %s307 = scalar_select %p306, %s303, 7
          %s308 = smul.addr %s305, 8
          %s309 = sadd.s32 %s307, %s308
          %s310 = smul.addr %s309, 8
          %s311 = scalar_lea.vmem %s0, %s310
          %s312 = smul.u32 4, %s25
        $region48: #{tpu_custom_call.1} parent=43 // pred_fallthru
          _
      $region44: #{tpu_custom_call.1} parent=5 // pred_fallthru
        _
      %p313 = scmp.le.s32.totalorder 1, %s17
      %p314 = scmp.lt.s32.totalorder %s17, 3
      %p315 = pnand %p313, %p314
      %p316 = pneg %p315
      // Predicated region
      $region49: #{tpu_custom_call.1} parent=5 // pred_check
        _
      $region50: #{tpu_custom_call.1} parent=5 // pred_check_branch
        %318 = sbr.rel (%p315) target = $region52
      $region51: #{tpu_custom_call.1} parent=5 // pred_region
        %s319 = ssub.s32 %s17, 1
        // Predicated region
        $region53: #{tpu_custom_call.1} parent=51 // pred_check
          %p320 = pneg %p99
        $region54: #{tpu_custom_call.1} parent=51 // pred_check_branch
          %322 = sbr.rel (%p320) target = $region56
        $region55: #{tpu_custom_call.1} parent=51 // pred_region
          %323 = dma.done [#allocation4], 2048
        $region56: #{tpu_custom_call.1} parent=51 // pred_fallthru
          _
        // Predicated region
        $region57: #{tpu_custom_call.1} parent=51 // pred_check
          %p324 = pneg %p141
        $region58: #{tpu_custom_call.1} parent=51 // pred_check_branch
          %326 = sbr.rel (%p324) target = $region60
        $region59: #{tpu_custom_call.1} parent=51 // pred_region
          %327 = dma.done [#allocation7], 2048
        $region60: #{tpu_custom_call.1} parent=51 // pred_fallthru
          _
        // Predicated region
        $region61: #{tpu_custom_call.1} parent=51 // pred_check
          %p328 = pneg %p183
        $region62: #{tpu_custom_call.1} parent=51 // pred_check_branch
          %330 = sbr.rel (%p328) target = $region64
        $region63: #{tpu_custom_call.1} parent=51 // pred_region
          %331 = dma.done [#allocation7], 2048
        $region64: #{tpu_custom_call.1} parent=51 // pred_fallthru
          _
        %s332 = smul.u32 4, %s27
        %p333 = scmp.lt.s32.totalorder %s26, 0
        %s334 = scalar_select %p333, %s26, 0
        %p335 = scmp.lt.s32.totalorder %s332, 7
        %s336 = scalar_select %p335, %s332, 7
        %s337 = smul.addr %s334, 8
        %s338 = sadd.s32 %s336, %s337
        %s339 = smul.addr %s338, 8
        %s340 = scalar_lea.vmem %s0, %s339
        %p341 = pneg %p57
        %p342 = pneg %p54
        %p343 = pneg %p78
        %p344 = pneg %p75
        %p345 = pneg %p99
        %p346 = pneg %p96
        %p347 = pneg %p120
        %p348 = pneg %p117
        %p349 = pneg %p141
        %p350 = pneg %p138
        %p351 = pneg %p162
        %p352 = pneg %p159
        %p353 = pneg %p183
        %p354 = pneg %p180
        %p355 = pneg %p204
        %p356 = pneg %p201
        %p357 = pneg %p230
        %p358 = pneg %p227
        %s359 = smul.u32 4, %s27
        %p360 = scmp.lt.s32.totalorder %s26, 0
        %s361 = scalar_select %p360, %s26, 0
        %p362 = scmp.lt.s32.totalorder %s359, 7
        %s363 = scalar_select %p362, %s359, 7
        %s364 = smul.addr %s361, 8
        %s365 = sadd.s32 %s363, %s364
        %s366 = smul.addr %s365, 8
        %s367 = scalar_lea.vmem %s0, %s366
        %s368 = smul.u32 4, %s27
        %p369 = scmp.eq.s32.totalorder %s27, 0
        // Predicated region
        $region65: #{tpu_custom_call.1} parent=51 // pred_check
          %p370 = pneg %p369
        $region66: #{tpu_custom_call.1} parent=51 // pred_check_branch
          %372 = sbr.rel (%p370) target = $region68
        $region67: #{tpu_custom_call.1} parent=51 // pred_region
          %373 = vst [vmem:[#allocation2] sm:$0xff] 0.0
        $region68: #{tpu_custom_call.1} parent=51 // pred_fallthru
          _
        %v374 = vld [vmem:[%s367] sm:$0xff]
        %v375 = vld [vmem:[%s367 + $0x8] sm:$0xff]
        %v376 = vld [vmem:[%s367 + $0x10] sm:$0xff]
        %v377 = vld [vmem:[%s367 + $0x18] sm:$0xff]
        %v378 = vld [vmem:[%s1] sm:$0xff]
        %v379 = vld [vmem:[%s1 + $0x8] sm:$0xff]
        %v380 = vld [vmem:[%s3] sm:$0x1]
        %v382 = vlaneseq
        %v383 = vshrl.u32 %v382, 7
        %v384 = vsub.s32 0, %v383
        %v385 = vrot.slane %v380, %v384
        %vm387 = vcmask 130048
        %v389 = vsel %vm387, %v374, 0
        %v392 = vsel %vm387, %v375, 0
        %v395 = vsel %vm387, %v376, 0
        %v398 = vsel %vm387, %v377, 0
        %400 = vmatprep.subr.mxu0 0.0
        %401 = vmatpush1.msra.mxu0 %v378
        %402 = vmatprep.subr.mxu0 0.0
        %403 = vmatpush1.msra.mxu0 %v379
        %404 = vmatprep.subr.mxu0 0.0
        %405 = vmatpush1.msra.mxu0 0.0
        %406 = vmatprep.subr.mxu0 0.0
        %407 = vmatpush1.msra.mxu0 0.0
        %408 = vmatprep.subr.mxu0 0.0
        %409 = vmatpush1.msra.mxu0 0.0
        %410 = vmatprep.subr.mxu0 0.0
        %411 = vmatpush1.msra.mxu0 0.0
        %412 = vmatprep.subr.mxu0 0.0
        %413 = vmatpush1.msra.mxu0 0.0
        %414 = vmatprep.subr.mxu0 0.0
        %415 = vmatpush1.msra.mxu0 0.0
        %416 = vmatprep.subr.mxu0 0.0
        %417 = vmatpush1.msra.mxu0 0.0
        %418 = vmatprep.subr.mxu0 0.0
        %419 = vmatpush1.msra.mxu0 0.0
        %420 = vmatprep.subr.mxu0 0.0
        %421 = vmatpush1.msra.mxu0 0.0
        %422 = vmatprep.subr.mxu0 0.0
        %423 = vmatpush1.msra.mxu0 0.0
        %424 = vmatprep.subr.mxu0 0.0
        %425 = vmatpush1.msra.mxu0 0.0
        %426 = vmatprep.subr.mxu0 0.0
        %427 = vmatpush1.msra.mxu0 0.0
        %428 = vmatprep.subr.mxu0 0.0
        %429 = vmatpush1.msra.mxu0 0.0
        %430 = vmatprep.subr.mxu0 0.0
        %431 = vmatpush1.msra.mxu0 0.0
        %432 = vmatprep.subr.mxu0 0.0
        %433 = vmatpush1.msra.mxu0 0.0
        %434 = vmatprep.subr.mxu0 0.0
        %435 = vmatpush1.msra.mxu0 0.0
        %436 = vmatprep.subr.mxu0 0.0
        %437 = vmatpush1.msra.mxu0 0.0
        %438 = vmatprep.subr.mxu0 0.0
        %439 = vmatpush1.msra.mxu0 0.0
        %440 = vmatprep.subr.mxu0 0.0
        %441 = vmatpush1.msra.mxu0 0.0
        %442 = vmatprep.subr.mxu0 0.0
        %443 = vmatpush1.msra.mxu0 0.0
        %444 = vmatprep.subr.mxu0 0.0
        %445 = vmatpush1.msra.mxu0 0.0
        %446 = vmatprep.subr.mxu0 0.0
        %447 = vmatpush1.msra.mxu0 0.0
        %448 = vmatprep.subr.mxu0 0.0
        %449 = vmatpush1.msra.mxu0 0.0
        %450 = vmatprep.subr.mxu0 0.0
        %451 = vmatpush1.msra.mxu0 0.0
        %452 = vmatprep.subr.mxu0 0.0
        %453 = vmatpush1.msra.mxu0 0.0
        %454 = vmatprep.subr.mxu0 0.0
        %455 = vmatpush1.msra.mxu0 0.0
        %456 = vmatprep.subr.mxu0 0.0
        %457 = vmatpush1.msra.mxu0 0.0
        %458 = vmatprep.subr.mxu0 0.0
        %459 = vmatpush1.msra.mxu0 0.0
        %460 = vmatprep.subr.mxu0 0.0
        %461 = vmatpush1.msra.mxu0 0.0
        %462 = vmatprep.subr.mxu0 0.0
        %463 = vmatpush1.msra.mxu0 0.0
        %464 = vmatprep.mubr.f32.mxu0 0.0
        %465 = vmatmul.mubr.f32.gmra.mrb[0].mxu0 %v389
        %v466 = vpop.f32.mrb[0].mxu0
        %v467 = vadd.f32 %v385, %v466
        %v468 = vpop.f32.mrb[0].mxu0
        %469 = vmatprep.mubr.f32.mxu0 0.0
        %470 = vmatmul.mubr.f32.gmra.mrb[0].mxu0 %v392
        %v471 = vpop.f32.mrb[0].mxu0
        %v472 = vadd.f32 %v385, %v471
        %v473 = vpop.f32.mrb[0].mxu0
        %474 = vmatprep.mubr.f32.mxu0 0.0
        %475 = vmatmul.mubr.f32.gmra.mrb[0].mxu0 %v395
        %v476 = vpop.f32.mrb[0].mxu0
        %v477 = vadd.f32 %v385, %v476
        %v478 = vpop.f32.mrb[0].mxu0
        %479 = vmatprep.mubr.f32.mxu0 0.0
        %480 = vmatmul.mubr.f32.gmra.mrb[0].mxu0 %v398
        %v481 = vpop.f32.mrb[0].mxu0
        %v482 = vadd.f32 %v385, %v481
        %v483 = vpop.f32.mrb[0].mxu0
        %484 = vdwg.mxu0
        %v485 = vld [vmem:[#allocation3] sm:$0xff]
        %v486 = vld [vmem:[#allocation3 + $0x8] sm:$0xff]
        %v487 = vld [vmem:[#allocation3 + $0x10] sm:$0xff]
        %v488 = vld [vmem:[#allocation3 + $0x18] sm:$0xff]
        %v489 = vld [vmem:[#allocation3 + $0x20] sm:$0xff]
        %v490 = vld [vmem:[#allocation3 + $0x28] sm:$0xff]
        %v491 = vld [vmem:[#allocation3 + $0x30] sm:$0xff]
        %v492 = vld [vmem:[#allocation3 + $0x38] sm:$0xff]
        %v493 = vld [vmem:[#allocation3 + $0x40] sm:$0xff]
        %v494 = vld [vmem:[#allocation3 + $0x48] sm:$0xff]
        %v495 = vld [vmem:[#allocation3 + $0x50] sm:$0xff]
        %v496 = vld [vmem:[#allocation3 + $0x58] sm:$0xff]
        %v497 = vld [vmem:[#allocation3 + $0x60] sm:$0xff]
        %v498 = vld [vmem:[#allocation3 + $0x68] sm:$0xff]
        %v499 = vld [vmem:[#allocation3 + $0x70] sm:$0xff]
        %v500 = vld [vmem:[#allocation3 + $0x78] sm:$0xff]
        %v501 = vld [vmem:[#allocation2] sm:$0xff]
        %502 = vmatprep.subr.mxu0 0.0
        %503 = vmatpush1.msra.mxu0 %v485
        %504 = vmatprep.subr.mxu0 0.0
        %505 = vmatpush1.msra.mxu0 %v486
        %506 = vmatprep.subr.mxu0 0.0
        %507 = vmatpush1.msra.mxu0 %v487
        %508 = vmatprep.subr.mxu0 0.0
        %509 = vmatpush1.msra.mxu0 %v488
        %510 = vmatprep.subr.mxu0 0.0
        %511 = vmatpush1.msra.mxu0 %v489
        %512 = vmatprep.subr.mxu0 0.0
        %513 = vmatpush1.msra.mxu0 %v490
        %514 = vmatprep.subr.mxu0 0.0
        %515 = vmatpush1.msra.mxu0 %v491
        %516 = vmatprep.subr.mxu0 0.0
        %517 = vmatpush1.msra.mxu0 %v492
        %518 = vmatprep.subr.mxu0 0.0
        %519 = vmatpush1.msra.mxu0 %v493
        %520 = vmatprep.subr.mxu0 0.0
        %521 = vmatpush1.msra.mxu0 %v494
        %522 = vmatprep.subr.mxu0 0.0
        %523 = vmatpush1.msra.mxu0 %v495
        %524 = vmatprep.subr.mxu0 0.0
        %525 = vmatpush1.msra.mxu0 %v496
        %526 = vmatprep.subr.mxu0 0.0
        %527 = vmatpush1.msra.mxu0 %v497
        %528 = vmatprep.subr.mxu0 0.0
        %529 = vmatpush1.msra.mxu0 %v498
        %530 = vmatprep.subr.mxu0 0.0
        %531 = vmatpush1.msra.mxu0 %v499
        %532 = vmatprep.subr.mxu0 0.0
        %533 = vmatpush1.msra.mxu0 %v500
        %534 = vmatprep.subr.mxu0 0.0
        %535 = vmatpush1.msra.mxu0 0.0
        %536 = vmatprep.subr.mxu0 0.0
        %537 = vmatpush1.msra.mxu0 0.0
        %538 = vmatprep.subr.mxu0 0.0
        %539 = vmatpush1.msra.mxu0 0.0
        %540 = vmatprep.subr.mxu0 0.0
        %541 = vmatpush1.msra.mxu0 0.0
        %542 = vmatprep.subr.mxu0 0.0
        %543 = vmatpush1.msra.mxu0 0.0
        %544 = vmatprep.subr.mxu0 0.0
        %545 = vmatpush1.msra.mxu0 0.0
        %546 = vmatprep.subr.mxu0 0.0
        %547 = vmatpush1.msra.mxu0 0.0
        %548 = vmatprep.subr.mxu0 0.0
        %549 = vmatpush1.msra.mxu0 0.0
        %550 = vmatprep.subr.mxu0 0.0
        %551 = vmatpush1.msra.mxu0 0.0
        %552 = vmatprep.subr.mxu0 0.0
        %553 = vmatpush1.msra.mxu0 0.0
        %554 = vmatprep.subr.mxu0 0.0
        %555 = vmatpush1.msra.mxu0 0.0
        %556 = vmatprep.subr.mxu0 0.0
        %557 = vmatpush1.msra.mxu0 0.0
        %558 = vmatprep.subr.mxu0 0.0
        %559 = vmatpush1.msra.mxu0 0.0
        %560 = vmatprep.subr.mxu0 0.0
        %561 = vmatpush1.msra.mxu0 0.0
        %562 = vmatprep.subr.mxu0 0.0
        %563 = vmatpush1.msra.mxu0 0.0
        %564 = vmatprep.subr.mxu0 0.0
        %565 = vmatpush1.msra.mxu0 0.0
        %566 = vmatprep.mubr.f32.mxu0 0.0
        %567 = vmatmul.mubr.f32.gmra.mrb[0].mxu0 %v501
        %v568 = vpop.f32.mrb[0].mxu0
        %v569 = vadd.f32 0.0, %v568
        %v570 = vpop.f32.mrb[0].mxu0
        %571 = vdwg.mxu0
        %v572 = vadd.f32 %v467, %v569
        %v573 = vtanh.pop %v572
        %574 = vmatprep.subr.mxu0 0.0
        %575 = vmatpush1.msra.mxu0 %v485
        %576 = vmatprep.subr.mxu0 0.0
        %577 = vmatpush1.msra.mxu0 %v486
        %578 = vmatprep.subr.mxu0 0.0
        %579 = vmatpush1.msra.mxu0 %v487
        %580 = vmatprep.subr.mxu0 0.0
        %581 = vmatpush1.msra.mxu0 %v488
        %582 = vmatprep.subr.mxu0 0.0
        %583 = vmatpush1.msra.mxu0 %v489
        %584 = vmatprep.subr.mxu0 0.0
        %585 = vmatpush1.msra.mxu0 %v490
        %586 = vmatprep.subr.mxu0 0.0
        %587 = vmatpush1.msra.mxu0 %v491
        %588 = vmatprep.subr.mxu0 0.0
        %589 = vmatpush1.msra.mxu0 %v492
        %590 = vmatprep.subr.mxu0 0.0
        %591 = vmatpush1.msra.mxu0 %v493
        %592 = vmatprep.subr.mxu0 0.0
        %593 = vmatpush1.msra.mxu0 %v494
        %594 = vmatprep.subr.mxu0 0.0
        %595 = vmatpush1.msra.mxu0 %v495
        %596 = vmatprep.subr.mxu0 0.0
        %597 = vmatpush1.msra.mxu0 %v496
        %598 = vmatprep.subr.mxu0 0.0
        %599 = vmatpush1.msra.mxu0 %v497
        %600 = vmatprep.subr.mxu0 0.0
        %601 = vmatpush1.msra.mxu0 %v498
        %602 = vmatprep.subr.mxu0 0.0
        %603 = vmatpush1.msra.mxu0 %v499
        %604 = vmatprep.subr.mxu0 0.0
        %605 = vmatpush1.msra.mxu0 %v500
        %606 = vmatprep.subr.mxu0 0.0
        %607 = vmatpush1.msra.mxu0 0.0
        %608 = vmatprep.subr.mxu0 0.0
        %609 = vmatpush1.msra.mxu0 0.0
        %610 = vmatprep.subr.mxu0 0.0
        %611 = vmatpush1.msra.mxu0 0.0
        %612 = vmatprep.subr.mxu0 0.0
        %613 = vmatpush1.msra.mxu0 0.0
        %614 = vmatprep.subr.mxu0 0.0
        %615 = vmatpush1.msra.mxu0 0.0
        %616 = vmatprep.subr.mxu0 0.0
        %617 = vmatpush1.msra.mxu0 0.0
        %618 = vmatprep.subr.mxu0 0.0
        %619 = vmatpush1.msra.mxu0 0.0
        %620 = vmatprep.subr.mxu0 0.0
        %621 = vmatpush1.msra.mxu0 0.0
        %622 = vmatprep.subr.mxu0 0.0
        %623 = vmatpush1.msra.mxu0 0.0
        %624 = vmatprep.subr.mxu0 0.0
        %625 = vmatpush1.msra.mxu0 0.0
        %626 = vmatprep.subr.mxu0 0.0
        %627 = vmatpush1.msra.mxu0 0.0
        %628 = vmatprep.subr.mxu0 0.0
        %629 = vmatpush1.msra.mxu0 0.0
        %630 = vmatprep.subr.mxu0 0.0
        %631 = vmatpush1.msra.mxu0 0.0
        %632 = vmatprep.subr.mxu0 0.0
        %633 = vmatpush1.msra.mxu0 0.0
        %634 = vmatprep.subr.mxu0 0.0
        %635 = vmatpush1.msra.mxu0 0.0
        %636 = vmatprep.subr.mxu0 0.0
        %637 = vmatpush1.msra.mxu0 0.0
        %638 = vmatprep.mubr.f32.mxu0 0.0
        %639 = vmatmul.mubr.f32.gmra.mrb[0].mxu0 %v573
        %v640 = vpop.f32.mrb[0].mxu0
        %v641 = vadd.f32 0.0, %v640
        %v642 = vpop.f32.mrb[0].mxu0
        %643 = vdwg.mxu0
        %v644 = vadd.f32 %v472, %v641
        %v645 = vtanh.pop %v644
        %646 = vmatprep.subr.mxu0 0.0
        %647 = vmatpush1.msra.mxu0 %v485
        %648 = vmatprep.subr.mxu0 0.0
        %649 = vmatpush1.msra.mxu0 %v486
        %650 = vmatprep.subr.mxu0 0.0
        %651 = vmatpush1.msra.mxu0 %v487
        %652 = vmatprep.subr.mxu0 0.0
        %653 = vmatpush1.msra.mxu0 %v488
        %654 = vmatprep.subr.mxu0 0.0
        %655 = vmatpush1.msra.mxu0 %v489
        %656 = vmatprep.subr.mxu0 0.0
        %657 = vmatpush1.msra.mxu0 %v490
        %658 = vmatprep.subr.mxu0 0.0
        %659 = vmatpush1.msra.mxu0 %v491
        %660 = vmatprep.subr.mxu0 0.0
        %661 = vmatpush1.msra.mxu0 %v492
        %662 = vmatprep.subr.mxu0 0.0
        %663 = vmatpush1.msra.mxu0 %v493
        %664 = vmatprep.subr.mxu0 0.0
        %665 = vmatpush1.msra.mxu0 %v494
        %666 = vmatprep.subr.mxu0 0.0
        %667 = vmatpush1.msra.mxu0 %v495
        %668 = vmatprep.subr.mxu0 0.0
        %669 = vmatpush1.msra.mxu0 %v496
        %670 = vmatprep.subr.mxu0 0.0
        %671 = vmatpush1.msra.mxu0 %v497
        %672 = vmatprep.subr.mxu0 0.0
        %673 = vmatpush1.msra.mxu0 %v498
        %674 = vmatprep.subr.mxu0 0.0
        %675 = vmatpush1.msra.mxu0 %v499
        %676 = vmatprep.subr.mxu0 0.0
        %677 = vmatpush1.msra.mxu0 %v500
        %678 = vmatprep.subr.mxu0 0.0
        %679 = vmatpush1.msra.mxu0 0.0
        %680 = vmatprep.subr.mxu0 0.0
        %681 = vmatpush1.msra.mxu0 0.0
        %682 = vmatprep.subr.mxu0 0.0
        %683 = vmatpush1.msra.mxu0 0.0
        %684 = vmatprep.subr.mxu0 0.0
        %685 = vmatpush1.msra.mxu0 0.0
        %686 = vmatprep.subr.mxu0 0.0
        %687 = vmatpush1.msra.mxu0 0.0
        %688 = vmatprep.subr.mxu0 0.0
        %689 = vmatpush1.msra.mxu0 0.0
        %690 = vmatprep.subr.mxu0 0.0
        %691 = vmatpush1.msra.mxu0 0.0
        %692 = vmatprep.subr.mxu0 0.0
        %693 = vmatpush1.msra.mxu0 0.0
        %694 = vmatprep.subr.mxu0 0.0
        %695 = vmatpush1.msra.mxu0 0.0
        %696 = vmatprep.subr.mxu0 0.0
        %697 = vmatpush1.msra.mxu0 0.0
        %698 = vmatprep.subr.mxu0 0.0
        %699 = vmatpush1.msra.mxu0 0.0
        %700 = vmatprep.subr.mxu0 0.0
        %701 = vmatpush1.msra.mxu0 0.0
        %702 = vmatprep.subr.mxu0 0.0
        %703 = vmatpush1.msra.mxu0 0.0
        %704 = vmatprep.subr.mxu0 0.0
        %705 = vmatpush1.msra.mxu0 0.0
        %706 = vmatprep.subr.mxu0 0.0
        %707 = vmatpush1.msra.mxu0 0.0
        %708 = vmatprep.subr.mxu0 0.0
        %709 = vmatpush1.msra.mxu0 0.0
        %710 = vmatprep.mubr.f32.mxu0 0.0
        %711 = vmatmul.mubr.f32.gmra.mrb[0].mxu0 %v645
        %v712 = vpop.f32.mrb[0].mxu0
        %v713 = vadd.f32 0.0, %v712
        %v714 = vpop.f32.mrb[0].mxu0
        %715 = vdwg.mxu0
        %v716 = vadd.f32 %v477, %v713
        %v717 = vtanh.pop %v716
        %718 = vmatprep.subr.mxu0 0.0
        %719 = vmatpush1.msra.mxu0 %v485
        %720 = vmatprep.subr.mxu0 0.0
        %721 = vmatpush1.msra.mxu0 %v486
        %722 = vmatprep.subr.mxu0 0.0
        %723 = vmatpush1.msra.mxu0 %v487
        %724 = vmatprep.subr.mxu0 0.0
        %725 = vmatpush1.msra.mxu0 %v488
        %726 = vmatprep.subr.mxu0 0.0
        %727 = vmatpush1.msra.mxu0 %v489
        %728 = vmatprep.subr.mxu0 0.0
        %729 = vmatpush1.msra.mxu0 %v490
        %730 = vmatprep.subr.mxu0 0.0
        %731 = vmatpush1.msra.mxu0 %v491
        %732 = vmatprep.subr.mxu0 0.0
        %733 = vmatpush1.msra.mxu0 %v492
        %734 = vmatprep.subr.mxu0 0.0
        %735 = vmatpush1.msra.mxu0 %v493
        %736 = vmatprep.subr.mxu0 0.0
        %737 = vmatpush1.msra.mxu0 %v494
        %738 = vmatprep.subr.mxu0 0.0
        %739 = vmatpush1.msra.mxu0 %v495
        %740 = vmatprep.subr.mxu0 0.0
        %741 = vmatpush1.msra.mxu0 %v496
        %742 = vmatprep.subr.mxu0 0.0
        %743 = vmatpush1.msra.mxu0 %v497
        %744 = vmatprep.subr.mxu0 0.0
        %745 = vmatpush1.msra.mxu0 %v498
        %746 = vmatprep.subr.mxu0 0.0
        %747 = vmatpush1.msra.mxu0 %v499
        %748 = vmatprep.subr.mxu0 0.0
        %749 = vmatpush1.msra.mxu0 %v500
        %750 = vmatprep.subr.mxu0 0.0
        %751 = vmatpush1.msra.mxu0 0.0
        %752 = vmatprep.subr.mxu0 0.0
        %753 = vmatpush1.msra.mxu0 0.0
        %754 = vmatprep.subr.mxu0 0.0
        %755 = vmatpush1.msra.mxu0 0.0
        %756 = vmatprep.subr.mxu0 0.0
        %757 = vmatpush1.msra.mxu0 0.0
        %758 = vmatprep.subr.mxu0 0.0
        %759 = vmatpush1.msra.mxu0 0.0
        %760 = vmatprep.subr.mxu0 0.0
        %761 = vmatpush1.msra.mxu0 0.0
        %762 = vmatprep.subr.mxu0 0.0
        %763 = vmatpush1.msra.mxu0 0.0
        %764 = vmatprep.subr.mxu0 0.0
        %765 = vmatpush1.msra.mxu0 0.0
        %766 = vmatprep.subr.mxu0 0.0
        %767 = vmatpush1.msra.mxu0 0.0
        %768 = vmatprep.subr.mxu0 0.0
        %769 = vmatpush1.msra.mxu0 0.0
        %770 = vmatprep.subr.mxu0 0.0
        %771 = vmatpush1.msra.mxu0 0.0
        %772 = vmatprep.subr.mxu0 0.0
        %773 = vmatpush1.msra.mxu0 0.0
        %774 = vmatprep.subr.mxu0 0.0
        %775 = vmatpush1.msra.mxu0 0.0
        %776 = vmatprep.subr.mxu0 0.0
        %777 = vmatpush1.msra.mxu0 0.0
        %778 = vmatprep.subr.mxu0 0.0
        %779 = vmatpush1.msra.mxu0 0.0
        %780 = vmatprep.subr.mxu0 0.0
        %781 = vmatpush1.msra.mxu0 0.0
        %782 = vmatprep.mubr.f32.mxu0 0.0
        %783 = vmatmul.mubr.f32.gmra.mrb[0].mxu0 %v717
        %v784 = vpop.f32.mrb[0].mxu0
        %v785 = vadd.f32 0.0, %v784
        %v786 = vpop.f32.mrb[0].mxu0
        %787 = vdwg.mxu0
        %v788 = vadd.f32 %v482, %v785
        %v789 = vtanh.pop %v788
        %790 = vst [vmem:[#allocation2] sm:$0xff] %v789
        %p791 = scmp.eq.s32.totalorder %s27, 1
        // Predicated region
        $region69: #{tpu_custom_call.1} parent=51 // pred_check
          %p792 = pneg %p791
        $region70: #{tpu_custom_call.1} parent=51 // pred_check_branch
          %794 = sbr.rel (%p792) target = $region72
        $region71: #{tpu_custom_call.1} parent=51 // pred_region
          %v795 = vld [vmem:[#allocation6] sm:$0xff]
          %v796 = vld [vmem:[#allocation6 + $0x8] sm:$0xff]
          %v797 = vld [vmem:[#allocation6 + $0x10] sm:$0xff]
          %v798 = vld [vmem:[#allocation6 + $0x18] sm:$0xff]
          %v799 = vld [vmem:[#allocation6 + $0x20] sm:$0xff]
          %v800 = vld [vmem:[#allocation6 + $0x28] sm:$0xff]
          %v801 = vld [vmem:[#allocation6 + $0x30] sm:$0xff]
          %v802 = vld [vmem:[#allocation6 + $0x38] sm:$0xff]
          %v803 = vld [vmem:[#allocation6 + $0x40] sm:$0xff]
          %v804 = vld [vmem:[#allocation6 + $0x48] sm:$0xff]
          %v805 = vld [vmem:[#allocation6 + $0x50] sm:$0xff]
          %v806 = vld [vmem:[#allocation6 + $0x58] sm:$0xff]
          %v807 = vld [vmem:[#allocation6 + $0x60] sm:$0xff]
          %v808 = vld [vmem:[#allocation6 + $0x68] sm:$0xff]
          %v809 = vld [vmem:[#allocation6 + $0x70] sm:$0xff]
          %v810 = vld [vmem:[#allocation6 + $0x78] sm:$0xff]
          %v811 = vld [vmem:[%s5] sm:$0x1]
          %v813 = vlaneseq
          %v814 = vshrl.u32 %v813, 7
          %v815 = vsub.s32 0, %v814
          %v816 = vrot.slane %v811, %v815
          %818 = vmatprep.subr.mxu0 0.0
          %819 = vmatpush1.msra.mxu0 %v795
          %820 = vmatprep.subr.mxu0 0.0
          %821 = vmatpush1.msra.mxu0 %v796
          %822 = vmatprep.subr.mxu0 0.0
          %823 = vmatpush1.msra.mxu0 %v797
          %824 = vmatprep.subr.mxu0 0.0
          %825 = vmatpush1.msra.mxu0 %v798
          %826 = vmatprep.subr.mxu0 0.0
          %827 = vmatpush1.msra.mxu0 %v799
          %828 = vmatprep.subr.mxu0 0.0
          %829 = vmatpush1.msra.mxu0 %v800
          %830 = vmatprep.subr.mxu0 0.0
          %831 = vmatpush1.msra.mxu0 %v801
          %832 = vmatprep.subr.mxu0 0.0
          %833 = vmatpush1.msra.mxu0 %v802
          %834 = vmatprep.subr.mxu0 0.0
          %835 = vmatpush1.msra.mxu0 %v803
          %836 = vmatprep.subr.mxu0 0.0
          %837 = vmatpush1.msra.mxu0 %v804
          %838 = vmatprep.subr.mxu0 0.0
          %839 = vmatpush1.msra.mxu0 %v805
          %840 = vmatprep.subr.mxu0 0.0
          %841 = vmatpush1.msra.mxu0 %v806
          %842 = vmatprep.subr.mxu0 0.0
          %843 = vmatpush1.msra.mxu0 %v807
          %844 = vmatprep.subr.mxu0 0.0
          %845 = vmatpush1.msra.mxu0 %v808
          %846 = vmatprep.subr.mxu0 0.0
          %847 = vmatpush1.msra.mxu0 %v809
          %848 = vmatprep.subr.mxu0 0.0
          %849 = vmatpush1.msra.mxu0 %v810
          %850 = vmatprep.subr.mxu0 0.0
          %851 = vmatpush1.msra.mxu0 0.0
          %852 = vmatprep.subr.mxu0 0.0
          %853 = vmatpush1.msra.mxu0 0.0
          %854 = vmatprep.subr.mxu0 0.0
          %855 = vmatpush1.msra.mxu0 0.0
          %856 = vmatprep.subr.mxu0 0.0
          %857 = vmatpush1.msra.mxu0 0.0
          %858 = vmatprep.subr.mxu0 0.0
          %859 = vmatpush1.msra.mxu0 0.0
          %860 = vmatprep.subr.mxu0 0.0
          %861 = vmatpush1.msra.mxu0 0.0
          %862 = vmatprep.subr.mxu0 0.0
          %863 = vmatpush1.msra.mxu0 0.0
          %864 = vmatprep.subr.mxu0 0.0
          %865 = vmatpush1.msra.mxu0 0.0
          %866 = vmatprep.subr.mxu0 0.0
          %867 = vmatpush1.msra.mxu0 0.0
          %868 = vmatprep.subr.mxu0 0.0
          %869 = vmatpush1.msra.mxu0 0.0
          %870 = vmatprep.subr.mxu0 0.0
          %871 = vmatpush1.msra.mxu0 0.0
          %872 = vmatprep.subr.mxu0 0.0
          %873 = vmatpush1.msra.mxu0 0.0
          %874 = vmatprep.subr.mxu0 0.0
          %875 = vmatpush1.msra.mxu0 0.0
          %876 = vmatprep.subr.mxu0 0.0
          %877 = vmatpush1.msra.mxu0 0.0
          %878 = vmatprep.subr.mxu0 0.0
          %879 = vmatpush1.msra.mxu0 0.0
          %880 = vmatprep.subr.mxu0 0.0
          %881 = vmatpush1.msra.mxu0 0.0
          %882 = vmatprep.mubr.f32.mxu0 0.0
          %883 = vmatmul.mubr.f32.gmra.mrb[0].mxu0 %v789
          %v884 = vpop.f32.mrb[0].mxu0
          %v885 = vadd.f32 %v816, %v884
          %v886 = vpop.f32.mrb[0].mxu0
          %887 = vdwg.mxu0
          %v888 = vmax.f32 %v885, 0.0
          %v889 = vld [vmem:[#allocation8] sm:$0xff]
          %v890 = vld [vmem:[#allocation8 + $0x8] sm:$0xff]
          %v891 = vld [vmem:[#allocation8 + $0x10] sm:$0xff]
          %v892 = vld [vmem:[#allocation8 + $0x18] sm:$0xff]
          %v893 = vld [vmem:[#allocation8 + $0x20] sm:$0xff]
          %v894 = vld [vmem:[#allocation8 + $0x28] sm:$0xff]
          %v895 = vld [vmem:[#allocation8 + $0x30] sm:$0xff]
          %v896 = vld [vmem:[#allocation8 + $0x38] sm:$0xff]
          %v897 = vld [vmem:[#allocation8 + $0x40] sm:$0xff]
          %v898 = vld [vmem:[#allocation8 + $0x48] sm:$0xff]
          %v899 = vld [vmem:[#allocation8 + $0x50] sm:$0xff]
          %v900 = vld [vmem:[#allocation8 + $0x58] sm:$0xff]
          %v901 = vld [vmem:[#allocation8 + $0x60] sm:$0xff]
          %v902 = vld [vmem:[#allocation8 + $0x68] sm:$0xff]
          %v903 = vld [vmem:[#allocation8 + $0x70] sm:$0xff]
          %v904 = vld [vmem:[#allocation8 + $0x78] sm:$0xff]
          %v905 = vld [vmem:[%s7] sm:$0x1]
          %v907 = vlaneseq
          %v908 = vshrl.u32 %v907, 7
          %v909 = vsub.s32 0, %v908
          %v910 = vrot.slane %v905, %v909
          %912 = vmatprep.subr.mxu0 0.0
          %913 = vmatpush1.msra.mxu0 %v889
          %914 = vmatprep.subr.mxu0 0.0
          %915 = vmatpush1.msra.mxu0 %v890
          %916 = vmatprep.subr.mxu0 0.0
          %917 = vmatpush1.msra.mxu0 %v891
          %918 = vmatprep.subr.mxu0 0.0
          %919 = vmatpush1.msra.mxu0 %v892
          %920 = vmatprep.subr.mxu0 0.0
          %921 = vmatpush1.msra.mxu0 %v893
          %922 = vmatprep.subr.mxu0 0.0
          %923 = vmatpush1.msra.mxu0 %v894
          %924 = vmatprep.subr.mxu0 0.0
          %925 = vmatpush1.msra.mxu0 %v895
          %926 = vmatprep.subr.mxu0 0.0
          %927 = vmatpush1.msra.mxu0 %v896
          %928 = vmatprep.subr.mxu0 0.0
          %929 = vmatpush1.msra.mxu0 %v897
          %930 = vmatprep.subr.mxu0 0.0
          %931 = vmatpush1.msra.mxu0 %v898
          %932 = vmatprep.subr.mxu0 0.0
          %933 = vmatpush1.msra.mxu0 %v899
          %934 = vmatprep.subr.mxu0 0.0
          %935 = vmatpush1.msra.mxu0 %v900
          %936 = vmatprep.subr.mxu0 0.0
          %937 = vmatpush1.msra.mxu0 %v901
          %938 = vmatprep.subr.mxu0 0.0
          %939 = vmatpush1.msra.mxu0 %v902
          %940 = vmatprep.subr.mxu0 0.0
          %941 = vmatpush1.msra.mxu0 %v903
          %942 = vmatprep.subr.mxu0 0.0
          %943 = vmatpush1.msra.mxu0 %v904
          %944 = vmatprep.subr.mxu0 0.0
          %945 = vmatpush1.msra.mxu0 0.0
          %946 = vmatprep.subr.mxu0 0.0
          %947 = vmatpush1.msra.mxu0 0.0
          %948 = vmatprep.subr.mxu0 0.0
          %949 = vmatpush1.msra.mxu0 0.0
          %950 = vmatprep.subr.mxu0 0.0
          %951 = vmatpush1.msra.mxu0 0.0
          %952 = vmatprep.subr.mxu0 0.0
          %953 = vmatpush1.msra.mxu0 0.0
          %954 = vmatprep.subr.mxu0 0.0
          %955 = vmatpush1.msra.mxu0 0.0
          %956 = vmatprep.subr.mxu0 0.0
          %957 = vmatpush1.msra.mxu0 0.0
          %958 = vmatprep.subr.mxu0 0.0
          %959 = vmatpush1.msra.mxu0 0.0
          %960 = vmatprep.subr.mxu0 0.0
          %961 = vmatpush1.msra.mxu0 0.0
          %962 = vmatprep.subr.mxu0 0.0
          %963 = vmatpush1.msra.mxu0 0.0
          %964 = vmatprep.subr.mxu0 0.0
          %965 = vmatpush1.msra.mxu0 0.0
          %966 = vmatprep.subr.mxu0 0.0
          %967 = vmatpush1.msra.mxu0 0.0
          %968 = vmatprep.subr.mxu0 0.0
          %969 = vmatpush1.msra.mxu0 0.0
          %970 = vmatprep.subr.mxu0 0.0
          %971 = vmatpush1.msra.mxu0 0.0
          %972 = vmatprep.subr.mxu0 0.0
          %973 = vmatpush1.msra.mxu0 0.0
          %974 = vmatprep.subr.mxu0 0.0
          %975 = vmatpush1.msra.mxu0 0.0
          %976 = vmatprep.mubr.f32.mxu0 0.0
          %977 = vmatmul.mubr.f32.gmra.mrb[0].mxu0 %v888
          %v978 = vpop.f32.mrb[0].mxu0
          %v979 = vadd.f32 %v910, %v978
          %v980 = vpop.f32.mrb[0].mxu0
          %981 = vdwg.mxu0
          %982 = vst [vmem:[#allocation9] sm:$0xff] %v979
        $region72: #{tpu_custom_call.1} parent=51 // pred_fallthru
          _
        // Predicated region
        $region73: #{tpu_custom_call.1} parent=51 // pred_check
          %p983 = pneg %p227
        $region74: #{tpu_custom_call.1} parent=51 // pred_check_branch
          %985 = sbr.rel (%p983) target = $region76
        $region75: #{tpu_custom_call.1} parent=51 // pred_region
          %s987 = ssub.s32 128, 128
          %988 = vsyncadd [#allocation5], %s987
          %s989 = smul.addr %s26, 128
          %s990 = scalar_lea.hbm %s8, %s989
          %s992 = sshll.u32 [#allocation9], 4
          %s993 = int_to_ptr.vmem [resolvable:$true] %s992
          %995 = dma.vmem_to_hbm [thread:$0]  %s993, 128, %s990, [#allocation5]
        $region76: #{tpu_custom_call.1} parent=51 // pred_fallthru
          _
        // Predicated region
        $region77: #{tpu_custom_call.1} parent=51 // pred_check
          %p996 = pneg %p227
        $region78: #{tpu_custom_call.1} parent=51 // pred_check_branch
          %998 = sbr.rel (%p996) target = $region80
        $region79: #{tpu_custom_call.1} parent=51 // pred_region
          %999 = dma.done [#allocation5], 128
        $region80: #{tpu_custom_call.1} parent=51 // pred_fallthru
          _
      $region52: #{tpu_custom_call.1} parent=5 // pred_fallthru
        _
      %p1000 = scmp.le.s32.totalorder 2, %s17
      // Predicated region
      $region81: #{tpu_custom_call.1} parent=5 // pred_check
        %p1001 = pneg %p1000
      $region82: #{tpu_custom_call.1} parent=5 // pred_check_branch
        %1003 = sbr.rel (%p1001) target = $region84
      $region83: #{tpu_custom_call.1} parent=5 // pred_region
        %s1004 = ssub.s32 %s17, 2
      $region84: #{tpu_custom_call.1} parent=5 // pred_fallthru
        _
    $region6: #{tpu_custom_call.1} parent=1 // loop_footer
      %s21 = sadd.s32 1, %s17
    $region7: #{tpu_custom_call.1} parent=1 // loop_footer_branch
      %16 = sbr.rel target = $region3
    $region8: #{tpu_custom_call.1} parent=1 // loop_exit
      _
    %1005 = vsyncpa [#allocation4], 1
    %s1006 = scalar_lea.sflag [#allocation4], 1
    %1007 = vsyncpa %s1006, 1
    %1008 = vsyncpa [#allocation7], 1
    %1009 = vsyncpa [#allocation5], 1
    %s1010 = scalar_lea.sflag [#allocation5], 1
    %1011 = vsyncpa %s1010, 1

</llo_original>
